<compile_context>
chip_gen: v7x
topology: tpu7x:2x2x1
jax: 0.10.0
libtpu: 0.0.40
codegen_flags: <defaults>
</compile_context>

<pallas_src>
import functools

import numpy as np

import jax
import jax.numpy as jnp
from jax.experimental import pallas as pl
from jax.experimental.pallas import tpu as pltpu


def _is_v7x():
    """Best-effort detection of a 2-TensorCore (v7x) chip from the default backend."""
    try:
        kind = jax.devices()[0].device_kind.lower()
    except Exception:
        kind = ""
    return "v7" in kind


def _make_conv_relu_kernel(H, W, Cin_p, Cout, KH, KW, pad, neg_slope, compute_dtype,
                           batch_tile):
    HW = H * W

    def kernel(x_ref, w_ref, b_ref, m_ref, o_ref):
        # x_ref: (batch_tile, Cin_p, H*W)  channels-first, flattened spatial on lanes
        # w_ref: (Cout, KH*KW*Cin_p)       im2col weights (tap-major, channel-minor K)
        # b_ref: (Cout, 1)                 f32 bias
        # m_ref: (KH*KW, H*W)              0/1 boundary masks (reproduce zero padding)
        # o_ref: (batch_tile, Cout, H*W)   flattened NCHW output block
        w = w_ref[...]                                   # resident across the (tiny) loop
        bias = b_ref[...]
        for n in range(batch_tile):                      # static unroll: 1 on v7x, N on 1-TC chips
            x = x_ref[n]                                 # (Cin_p, HW) f32
            taps = []
            for dh in range(KH):
                for dw in range(KW):
                    k = dh * KW + dw
                    off = (dh - pad) * W + (dw - pad)    # flattened shift of this tap
                    if off == 0:
                        tap = x                          # center tap: no shift, no mask
                    else:
                        # Lane rotation on the XLU (otherwise idle slot) instead of
                        # slice+reshape VMEM copies; the mask zeroes positions whose
                        # source pixel lies outside the image (the zero padding).
                        tap = pltpu.roll(x, shift=(-off) % HW, axis=1)
                        tap = tap * m_ref[k:k + 1, :]
                    taps.append(tap)
            # im2col block: sublane-tile-aligned concat (each piece is Cin_p = 8k rows).
            patch = jnp.concatenate(taps, axis=0)        # (KH*KW*Cin_p, HW) f32
            patch = patch.astype(compute_dtype)          # single hoisted cast (bf16 path)
            # ONE MXU matmul; the K=KH*KW*Cin_p reduction happens inside the MXU.
            acc = jnp.dot(w, patch, preferred_element_type=jnp.float32)   # (Cout, HW) f32
            y = acc + bias
            y = jnp.where(y > 0, y, neg_slope * y)       # LeakyReLU(0.01), f32 epilogue
            o_ref[n] = y.astype(o_ref.dtype)             # lane-dense unmasked store

    return kernel


@functools.partial(jax.jit,
                   static_argnames=("neg_slope", "compute_dtype", "batch_tile"))
def _conv_relu_impl(x_nchw, w_oihw, b, *, neg_slope, compute_dtype, batch_tile):
    N, Cin, H, W = x_nchw.shape
    Cout, Cin_w, KH, KW = w_oihw.shape
    assert Cin_w == Cin
    pad = (KH - 1) // 2
    assert KH == KW and 2 * pad == KH - 1, "kernel assumes stride=1, odd 'same' kernel"
    assert N % batch_tile == 0
    HW = H * W
    K = KH * KW
    # Pad the channel dim to the f32 sublane tile so the in-kernel im2col concat is
    # tile-aligned (no-op when Cin is already a multiple of 8).
    Cin_p = ((Cin + 7) // 8) * 8

    # --- glue: trailing-dim reshapes + tiny channel zero-pad; no transpose / spatial pad ---
    x_flat = x_nchw.reshape(N, Cin, HW)                               # bitcast reshape
    if Cin_p != Cin:
        x_flat = jnp.pad(x_flat, ((0, 0), (0, Cin_p - Cin), (0, 0)))
    # im2col weights: (Cout, K*Cin_p), row-K index = (dh*KW + dw)*Cin_p + c; padded
    # channels get zero weights so the fused matmul result is unchanged.
    w_t = jnp.transpose(w_oihw, (0, 2, 3, 1))                         # (Cout, KH, KW, Cin)
    if Cin_p != Cin:
        w_t = jnp.pad(w_t, ((0, 0), (0, 0), (0, 0), (0, Cin_p - Cin)))
    w_r = w_t.reshape(Cout, K * Cin_p).astype(compute_dtype)
    b2 = b.reshape(Cout, 1).astype(jnp.float32)

    # Boundary masks precomputed at trace time (compile-time constants, K*HW*4 B = 9 KiB
    # here); kept f32 since masking runs pre-cast on the f32 taps.
    hh, ww = np.meshgrid(np.arange(H), np.arange(W), indexing="ij")
    hh = hh.reshape(-1)
    ww = ww.reshape(-1)
    masks_np = np.ones((K, HW), np.float32)
    for dh in range(KH):
        for dw in range(KW):
            hin = hh + dh - pad
            win = ww + dw - pad
            masks_np[dh * KW + dw] = (
                (hin >= 0) & (hin < H) & (win >= 0) & (win < W)
            ).astype(np.float32)
    masks = jnp.asarray(masks_np)

    grid = (N // batch_tile,)
    out_flat = pl.pallas_call(
        _make_conv_relu_kernel(H, W, Cin_p, Cout, KH, KW, pad, neg_slope,
                               compute_dtype, batch_tile),
        out_shape=jax.ShapeDtypeStruct((N, Cout, HW), jnp.float32),
        grid=grid,
        in_specs=[
            pl.BlockSpec((batch_tile, Cin_p, HW), lambda n: (n, 0, 0)),
            pl.BlockSpec((Cout, K * Cin_p), lambda n: (0, 0)),
            pl.BlockSpec((Cout, 1), lambda n: (0, 0)),
            pl.BlockSpec((K, HW), lambda n: (0, 0)),
        ],
        out_specs=pl.BlockSpec((batch_tile, Cout, HW), lambda n: (n, 0, 0)),
        # On v7x the batch grid axis is the cross-TensorCore parallelism; switch to
        # pltpu.CORE_PARALLEL if a profile shows plain "parallel" not sharding it.
        compiler_params=pltpu.CompilerParams(
            dimension_semantics=("parallel",)),
    )(x_flat, w_r, b2, masks)

    return out_flat.reshape(N, Cout, H, W)                            # already NCHW


def conv_relu(x_nchw, w_oihw, b, neg_slope=0.01, compute_dtype=None, batch_tile=None):
    """Conv2d(ks=3, stride=1, pad=1) + LeakyReLU.  x: NCHW, w: OIHW, b: (Out,).

    Device-aware defaults:
      * v7x:    bf16 MXU operands (f32 accumulation) and batch_tile=1, so grid=(N,)
                feeds both TensorCores.
      * v5e/v6e: f32 operands and the whole batch in ONE grid step (single TC; removes
                per-step serial-loop overhead at these tiny shapes).
    """
    is_v7 = _is_v7x()
    if compute_dtype is None:
        compute_dtype = jnp.bfloat16 if is_v7 else jnp.float32
    if batch_tile is None:
        batch_tile = 1 if is_v7 else int(x_nchw.shape[0])
    return _conv_relu_impl(x_nchw, w_oihw, b, neg_slope=neg_slope,
                           compute_dtype=compute_dtype, batch_tile=batch_tile)


def _reference(x_nchw, w_oihw, b, neg_slope=0.01):
    y = jax.lax.conv_general_dilated(
        x_nchw, w_oihw, window_strides=(1, 1),
        padding=((1, 1), (1, 1)),
        dimension_numbers=("NCHW", "OIHW", "NCHW"))
    y = y + b[None, :, None, None]
    return jnp.where(y > 0, y, neg_slope * y)


if __name__ == "__main__":
    # ConvRelu(In=4, Out=8) on a small NCHW input.
    In, Out, KS = 4, 8, 3
    N, H, W = 2, 16, 16

    key = jax.random.PRNGKey(0)
    kx, kw, kb = jax.random.split(key, 3)

    x = jax.random.normal(kx, (N, In, H, W), dtype=jnp.float32)

    # Deterministic parameter init (mimics PyTorch Conv2d uniform init bounds).
    fan_in = In * KS * KS
    bound = 1.0 / (fan_in ** 0.5)
    w = jax.random.uniform(kw, (Out, In, KS, KS), jnp.float32, -bound, bound)
    b = jax.random.uniform(kb, (Out,), jnp.float32, -bound, bound)

    ref = _reference(x, w, b)

    # f32 operands, batch collapsed into one grid step (the v5e/v6e configuration).
    out = jax.block_until_ready(conv_relu(x, w, b, compute_dtype=jnp.float32, batch_tile=N))
    assert out.shape == (N, Out, H, W)
    assert jnp.allclose(out, ref, rtol=1e-3, atol=1e-3), "mismatch (f32, batch_tile=N)"

    # f32 operands, grid over batch (the v7x megacore configuration).
    out1 = jax.block_until_ready(conv_relu(x, w, b, compute_dtype=jnp.float32, batch_tile=1))
    assert jnp.allclose(out1, ref, rtol=1e-3, atol=1e-3), "mismatch (f32, batch_tile=1)"

    # bf16 MXU operands with f32 accumulation.
    out_bf16 = jax.block_until_ready(conv_relu(x, w, b, compute_dtype=jnp.bfloat16))
    ref_bf16 = _reference(x.astype(jnp.bfloat16).astype(jnp.float32),
                          w.astype(jnp.bfloat16).astype(jnp.float32), b)
    assert jnp.allclose(out_bf16, ref_bf16, rtol=1e-2, atol=1e-2), "mismatch (bf16 path)"

    # Device-default path (bf16 + per-image grid on v7x; f32 + single step elsewhere).
    out_def = jax.block_until_ready(conv_relu(x, w, b))
    assert jnp.allclose(out_def, ref, rtol=2e-2, atol=2e-2), "mismatch (device-default path)"

    print("KERNEL_OK")
</pallas_src>

<mosaic_0001>
module attributes {stable_mosaic.version = 11 : i64} {
  func.func @kernel(%arg0: i32, %arg1: memref<2x8x256xf32, #tpu.memory_space<vmem>>, %arg2: memref<8x72xf32, #tpu.memory_space<vmem>>, %arg3: memref<8x1xf32, #tpu.memory_space<vmem>>, %arg4: memref<9x256xf32, #tpu.memory_space<vmem>>, %arg5: memref<2x8x256xf32, #tpu.memory_space<vmem>>) attributes {dimension_semantics = [#tpu.dimension_semantics<parallel>], iteration_bounds = array<i64: 1>, scalar_prefetch = 0 : i64, scratch_operands = 0 : i64, tpu.core_type = #tpu.core_type<tc>, window_params = [{transform_indices = @transform_0, window_bounds = array<i64: 2, 8, 256>}, {pipeline_mode = #tpu.pipeline_mode<synchronous>, transform_indices = @transform_1, window_bounds = array<i64: 8, 72>}, {pipeline_mode = #tpu.pipeline_mode<synchronous>, transform_indices = @transform_2, window_bounds = array<i64: 8, 1>}, {pipeline_mode = #tpu.pipeline_mode<synchronous>, transform_indices = @transform_3, window_bounds = array<i64: 9, 256>}, {transform_indices = @transform_4, window_bounds = array<i64: 2, 8, 256>}]} {
    %c0 = arith.constant 0 : index
    %c0_0 = arith.constant 0 : index
    %0 = vector.load %arg2[%c0, %c0_0] : memref<8x72xf32, #tpu.memory_space<vmem>>, vector<8x72xf32>
    %c0_1 = arith.constant 0 : index
    %c0_2 = arith.constant 0 : index
    %1 = vector.load %arg3[%c0_1, %c0_2] : memref<8x1xf32, #tpu.memory_space<vmem>>, vector<8x1xf32>
    %c0_3 = arith.constant 0 : index
    %c0_4 = arith.constant 0 : index
    %c0_5 = arith.constant 0 : index
    %2 = vector.load %arg1[%c0_3, %c0_4, %c0_5] : memref<2x8x256xf32, #tpu.memory_space<vmem>>, vector<1x8x256xf32>
    %3 = vector.shape_cast %2 : vector<1x8x256xf32> to vector<8x256xf32>
    %c17_i32 = arith.constant 17 : i32
    %4 = tpu.dynamic_rotate %3 by %c17_i32 dim 1 : vector<8x256xf32>, i32 -> vector<8x256xf32>
    %c0_6 = arith.constant 0 : index
    %c0_7 = arith.constant 0 : index
    %5 = vector.load %arg4[%c0_6, %c0_7] : memref<9x256xf32, #tpu.memory_space<vmem>>, vector<1x256xf32>
    %6 = vector.broadcast %5 : vector<1x256xf32> to vector<8x256xf32>
    %7 = arith.mulf %4, %6 : vector<8x256xf32>
    %c16_i32 = arith.constant 16 : i32
    %8 = tpu.dynamic_rotate %3 by %c16_i32 dim 1 : vector<8x256xf32>, i32 -> vector<8x256xf32>
    %c1 = arith.constant 1 : index
    %c0_8 = arith.constant 0 : index
    %9 = vector.load %arg4[%c1, %c0_8] : memref<9x256xf32, #tpu.memory_space<vmem>>, vector<1x256xf32>
    %10 = vector.broadcast %9 : vector<1x256xf32> to vector<8x256xf32>
    %11 = arith.mulf %8, %10 : vector<8x256xf32>
    %c15_i32 = arith.constant 15 : i32
    %12 = tpu.dynamic_rotate %3 by %c15_i32 dim 1 : vector<8x256xf32>, i32 -> vector<8x256xf32>
    %c2 = arith.constant 2 : index
    %c0_9 = arith.constant 0 : index
    %13 = vector.load %arg4[%c2, %c0_9] : memref<9x256xf32, #tpu.memory_space<vmem>>, vector<1x256xf32>
    %14 = vector.broadcast %13 : vector<1x256xf32> to vector<8x256xf32>
    %15 = arith.mulf %12, %14 : vector<8x256xf32>
    %c1_i32 = arith.constant 1 : i32
    %16 = tpu.dynamic_rotate %3 by %c1_i32 dim 1 : vector<8x256xf32>, i32 -> vector<8x256xf32>
    %c3 = arith.constant 3 : index
    %c0_10 = arith.constant 0 : index
    %17 = vector.load %arg4[%c3, %c0_10] : memref<9x256xf32, #tpu.memory_space<vmem>>, vector<1x256xf32>
    %18 = vector.broadcast %17 : vector<1x256xf32> to vector<8x256xf32>
    %19 = arith.mulf %16, %18 : vector<8x256xf32>
    %c255_i32 = arith.constant 255 : i32
    %20 = tpu.dynamic_rotate %3 by %c255_i32 dim 1 : vector<8x256xf32>, i32 -> vector<8x256xf32>
    %c5 = arith.constant 5 : index
    %c0_11 = arith.constant 0 : index
    %21 = vector.load %arg4[%c5, %c0_11] : memref<9x256xf32, #tpu.memory_space<vmem>>, vector<1x256xf32>
    %22 = vector.broadcast %21 : vector<1x256xf32> to vector<8x256xf32>
    %23 = arith.mulf %20, %22 : vector<8x256xf32>
    %c241_i32 = arith.constant 241 : i32
    %24 = tpu.dynamic_rotate %3 by %c241_i32 dim 1 : vector<8x256xf32>, i32 -> vector<8x256xf32>
    %c6 = arith.constant 6 : index
    %c0_12 = arith.constant 0 : index
    %25 = vector.load %arg4[%c6, %c0_12] : memref<9x256xf32, #tpu.memory_space<vmem>>, vector<1x256xf32>
    %26 = vector.broadcast %25 : vector<1x256xf32> to vector<8x256xf32>
    %27 = arith.mulf %24, %26 : vector<8x256xf32>
    %c240_i32 = arith.constant 240 : i32
    %28 = tpu.dynamic_rotate %3 by %c240_i32 dim 1 : vector<8x256xf32>, i32 -> vector<8x256xf32>
    %c7 = arith.constant 7 : index
    %c0_13 = arith.constant 0 : index
    %29 = vector.load %arg4[%c7, %c0_13] : memref<9x256xf32, #tpu.memory_space<vmem>>, vector<1x256xf32>
    %30 = vector.broadcast %29 : vector<1x256xf32> to vector<8x256xf32>
    %31 = arith.mulf %28, %30 : vector<8x256xf32>
    %c239_i32 = arith.constant 239 : i32
    %32 = tpu.dynamic_rotate %3 by %c239_i32 dim 1 : vector<8x256xf32>, i32 -> vector<8x256xf32>
    %c8 = arith.constant 8 : index
    %c0_14 = arith.constant 0 : index
    %33 = vector.load %arg4[%c8, %c0_14] : memref<9x256xf32, #tpu.memory_space<vmem>>, vector<1x256xf32>
    %34 = vector.broadcast %33 : vector<1x256xf32> to vector<8x256xf32>
    %35 = arith.mulf %32, %34 : vector<8x256xf32>
    %36 = tpu.concatenate %7, %11, %15, %19, %3, %23, %27, %31, %35 in 0 : vector<8x256xf32>, vector<8x256xf32>, vector<8x256xf32>, vector<8x256xf32>, vector<8x256xf32>, vector<8x256xf32>, vector<8x256xf32>, vector<8x256xf32>, vector<8x256xf32> -> vector<72x256xf32>
    %cst = arith.constant dense<0.000000e+00> : vector<8x256xf32>
    %37 = tpu.matmul %0, %36, %cst {dimension_numbers = #tpu.dot_dimension_numbers<[1], [0], [0], [1], [0, 0, 1, 1], [], []>} : vector<8x72xf32>, vector<72x256xf32>, vector<8x256xf32> -> vector<8x256xf32>
    %38 = vector.broadcast %1 : vector<8x1xf32> to vector<8x256xf32>
    %39 = arith.addf %37, %38 : vector<8x256xf32>
    %cst_15 = arith.constant 0.000000e+00 : f32
    %40 = vector.broadcast %cst_15 : f32 to vector<8x256xf32>
    %41 = arith.cmpf ogt, %39, %40 : vector<8x256xf32>
    %cst_16 = arith.constant 0.00999999977 : f32
    %42 = vector.broadcast %cst_16 : f32 to vector<8x256xf32>
    %43 = arith.mulf %42, %39 : vector<8x256xf32>
    %44 = arith.select %41, %39, %43 : vector<8x256xi1>, vector<8x256xf32>
    %c0_17 = arith.constant 0 : index
    %c0_18 = arith.constant 0 : index
    %c0_19 = arith.constant 0 : index
    %45 = vector.load %arg5[%c0_17, %c0_18, %c0_19] : memref<2x8x256xf32, #tpu.memory_space<vmem>>, vector<1x8x256xf32>
    %46 = vector.shape_cast %45 : vector<1x8x256xf32> to vector<8x256xf32>
    %47 = vector.shape_cast %44 : vector<8x256xf32> to vector<1x8x256xf32>
    tpu.vector_store %arg5[%c0_17, %c0_18, %c0_19], %47 {strides = array<i32>} : memref<2x8x256xf32, #tpu.memory_space<vmem>>, vector<1x8x256xf32>,
    %c1_20 = arith.constant 1 : index
    %c0_21 = arith.constant 0 : index
    %c0_22 = arith.constant 0 : index
    %48 = vector.load %arg1[%c1_20, %c0_21, %c0_22] : memref<2x8x256xf32, #tpu.memory_space<vmem>>, vector<1x8x256xf32>
    %49 = vector.shape_cast %48 : vector<1x8x256xf32> to vector<8x256xf32>
    %c17_i32_23 = arith.constant 17 : i32
    %50 = tpu.dynamic_rotate %49 by %c17_i32_23 dim 1 : vector<8x256xf32>, i32 -> vector<8x256xf32>
    %c0_24 = arith.constant 0 : index
    %c0_25 = arith.constant 0 : index
    %51 = vector.load %arg4[%c0_24, %c0_25] : memref<9x256xf32, #tpu.memory_space<vmem>>, vector<1x256xf32>
    %52 = vector.broadcast %51 : vector<1x256xf32> to vector<8x256xf32>
    %53 = arith.mulf %50, %52 : vector<8x256xf32>
    %c16_i32_26 = arith.constant 16 : i32
    %54 = tpu.dynamic_rotate %49 by %c16_i32_26 dim 1 : vector<8x256xf32>, i32 -> vector<8x256xf32>
    %c1_27 = arith.constant 1 : index
    %c0_28 = arith.constant 0 : index
    %55 = vector.load %arg4[%c1_27, %c0_28] : memref<9x256xf32, #tpu.memory_space<vmem>>, vector<1x256xf32>
    %56 = vector.broadcast %55 : vector<1x256xf32> to vector<8x256xf32>
    %57 = arith.mulf %54, %56 : vector<8x256xf32>
    %c15_i32_29 = arith.constant 15 : i32
    %58 = tpu.dynamic_rotate %49 by %c15_i32_29 dim 1 : vector<8x256xf32>, i32 -> vector<8x256xf32>
    %c2_30 = arith.constant 2 : index
    %c0_31 = arith.constant 0 : index
    %59 = vector.load %arg4[%c2_30, %c0_31] : memref<9x256xf32, #tpu.memory_space<vmem>>, vector<1x256xf32>
    %60 = vector.broadcast %59 : vector<1x256xf32> to vector<8x256xf32>
    %61 = arith.mulf %58, %60 : vector<8x256xf32>
    %c1_i32_32 = arith.constant 1 : i32
    %62 = tpu.dynamic_rotate %49 by %c1_i32_32 dim 1 : vector<8x256xf32>, i32 -> vector<8x256xf32>
    %c3_33 = arith.constant 3 : index
    %c0_34 = arith.constant 0 : index
    %63 = vector.load %arg4[%c3_33, %c0_34] : memref<9x256xf32, #tpu.memory_space<vmem>>, vector<1x256xf32>
    %64 = vector.broadcast %63 : vector<1x256xf32> to vector<8x256xf32>
    %65 = arith.mulf %62, %64 : vector<8x256xf32>
    %c255_i32_35 = arith.constant 255 : i32
    %66 = tpu.dynamic_rotate %49 by %c255_i32_35 dim 1 : vector<8x256xf32>, i32 -> vector<8x256xf32>
    %c5_36 = arith.constant 5 : index
    %c0_37 = arith.constant 0 : index
    %67 = vector.load %arg4[%c5_36, %c0_37] : memref<9x256xf32, #tpu.memory_space<vmem>>, vector<1x256xf32>
    %68 = vector.broadcast %67 : vector<1x256xf32> to vector<8x256xf32>
    %69 = arith.mulf %66, %68 : vector<8x256xf32>
    %c241_i32_38 = arith.constant 241 : i32
    %70 = tpu.dynamic_rotate %49 by %c241_i32_38 dim 1 : vector<8x256xf32>, i32 -> vector<8x256xf32>
    %c6_39 = arith.constant 6 : index
    %c0_40 = arith.constant 0 : index
    %71 = vector.load %arg4[%c6_39, %c0_40] : memref<9x256xf32, #tpu.memory_space<vmem>>, vector<1x256xf32>
    %72 = vector.broadcast %71 : vector<1x256xf32> to vector<8x256xf32>
    %73 = arith.mulf %70, %72 : vector<8x256xf32>
    %c240_i32_41 = arith.constant 240 : i32
    %74 = tpu.dynamic_rotate %49 by %c240_i32_41 dim 1 : vector<8x256xf32>, i32 -> vector<8x256xf32>
    %c7_42 = arith.constant 7 : index
    %c0_43 = arith.constant 0 : index
    %75 = vector.load %arg4[%c7_42, %c0_43] : memref<9x256xf32, #tpu.memory_space<vmem>>, vector<1x256xf32>
    %76 = vector.broadcast %75 : vector<1x256xf32> to vector<8x256xf32>
    %77 = arith.mulf %74, %76 : vector<8x256xf32>
    %c239_i32_44 = arith.constant 239 : i32
    %78 = tpu.dynamic_rotate %49 by %c239_i32_44 dim 1 : vector<8x256xf32>, i32 -> vector<8x256xf32>
    %c8_45 = arith.constant 8 : index
    %c0_46 = arith.constant 0 : index
    %79 = vector.load %arg4[%c8_45, %c0_46] : memref<9x256xf32, #tpu.memory_space<vmem>>, vector<1x256xf32>
    %80 = vector.broadcast %79 : vector<1x256xf32> to vector<8x256xf32>
    %81 = arith.mulf %78, %80 : vector<8x256xf32>
    %82 = tpu.concatenate %53, %57, %61, %65, %49, %69, %73, %77, %81 in 0 : vector<8x256xf32>, vector<8x256xf32>, vector<8x256xf32>, vector<8x256xf32>, vector<8x256xf32>, vector<8x256xf32>, vector<8x256xf32>, vector<8x256xf32>, vector<8x256xf32> -> vector<72x256xf32>
    %cst_47 = arith.constant dense<0.000000e+00> : vector<8x256xf32>
    %83 = tpu.matmul %0, %82, %cst_47 {dimension_numbers = #tpu.dot_dimension_numbers<[1], [0], [0], [1], [0, 0, 1, 1], [], []>} : vector<8x72xf32>, vector<72x256xf32>, vector<8x256xf32> -> vector<8x256xf32>
    %84 = vector.broadcast %1 : vector<8x1xf32> to vector<8x256xf32>
    %85 = arith.addf %83, %84 : vector<8x256xf32>
    %cst_48 = arith.constant 0.000000e+00 : f32
    %86 = vector.broadcast %cst_48 : f32 to vector<8x256xf32>
    %87 = arith.cmpf ogt, %85, %86 : vector<8x256xf32>
    %cst_49 = arith.constant 0.00999999977 : f32
    %88 = vector.broadcast %cst_49 : f32 to vector<8x256xf32>
    %89 = arith.mulf %88, %85 : vector<8x256xf32>
    %90 = arith.select %87, %85, %89 : vector<8x256xi1>, vector<8x256xf32>
    %c1_50 = arith.constant 1 : index
    %c0_51 = arith.constant 0 : index
    %c0_52 = arith.constant 0 : index
    %91 = vector.load %arg5[%c1_50, %c0_51, %c0_52] : memref<2x8x256xf32, #tpu.memory_space<vmem>>, vector<1x8x256xf32>
    %92 = vector.shape_cast %91 : vector<1x8x256xf32> to vector<8x256xf32>
    %93 = vector.shape_cast %90 : vector<8x256xf32> to vector<1x8x256xf32>
    tpu.vector_store %arg5[%c1_50, %c0_51, %c0_52], %93 {strides = array<i32>} : memref<2x8x256xf32, #tpu.memory_space<vmem>>, vector<1x8x256xf32>,
    return
  }
  func.func @transform_0(%arg0: i32) -> (i32, i32, i32) {
    %c0_i32 = arith.constant 0 : i32
    %c0_i32_0 = arith.constant 0 : i32
    %c0_i32_1 = arith.constant 0 : i32
    return %arg0, %c0_i32, %c0_i32_0 : i32, i32, i32
  }
  func.func @transform_1(%arg0: i32) -> (i32, i32) {
    %c0_i32 = arith.constant 0 : i32
    %c0_i32_0 = arith.constant 0 : i32
    %c0_i32_1 = arith.constant 0 : i32
    return %c0_i32, %c0_i32_0 : i32, i32
  }
  func.func @transform_2(%arg0: i32) -> (i32, i32) {
    %c0_i32 = arith.constant 0 : i32
    %c0_i32_0 = arith.constant 0 : i32
    %c0_i32_1 = arith.constant 0 : i32
    return %c0_i32, %c0_i32_0 : i32, i32
  }
  func.func @transform_3(%arg0: i32) -> (i32, i32) {
    %c0_i32 = arith.constant 0 : i32
    %c0_i32_0 = arith.constant 0 : i32
    %c0_i32_1 = arith.constant 0 : i32
    return %c0_i32, %c0_i32_0 : i32, i32
  }
  func.func @transform_4(%arg0: i32) -> (i32, i32, i32) {
    %c0_i32 = arith.constant 0 : i32
    %c0_i32_0 = arith.constant 0 : i32
    %c0_i32_1 = arith.constant 0 : i32
    return %arg0, %c0_i32, %c0_i32_0 : i32, i32, i32
  }
}

</mosaic_0001>

<llo_original>
// kernel: _conv_relu_impl.1
$region0: #{_conv_relu_impl.1}
  #allocation0 [shape = 'u32[]', space=smem, size = 0x4, offset = 0x4, fixed_abs, tag = 'smem constant byte address 0x4 - core index']
  #allocation1 [shape = 'u32[144,128]{1,0:T(1,128)}', space=vmem, size = 0x12000, scoped, tag = 'internal scratch']
  %s0 = inlined_call_operand.vmem [shape: f32[2,8,256], index: 0, kind: input, shape index: {}]
  %s1 = inlined_call_operand.vmem [shape: f32[8,72], index: 1, kind: input, shape index: {}]
  %s2 = inlined_call_operand.vmem [shape: f32[8,1], index: 2, kind: input, shape index: {}]
  %s3 = inlined_call_operand.vmem [shape: f32[9,256], index: 3, kind: input, shape index: {}]
  %s4 = inlined_call_operand.vmem [shape: f32[2,8,256], index: 4, kind: output, shape index: {}]
  %s5 = sld [smem:[#allocation0]]
  $region26: #{_conv_relu_impl.1} parent=0
    _
  %s7 = ssub.s32 1, %s5
  %s8 = scalar_select 0, %s7, %s5
  // Predicated region
  $region2: #{_conv_relu_impl.1} parent=0 // pred_check
    _
  $region3: #{_conv_relu_impl.1} parent=0 // pred_check_branch
    %10 = sbr.rel (0) target = $region5
  $region4: #{_conv_relu_impl.1} parent=0 // pred_region
    _
  $region5: #{_conv_relu_impl.1} parent=0 // pred_fallthru
    _
  // Predicated region
  $region6: #{_conv_relu_impl.1} parent=0 // pred_check
    _
  $region7: #{_conv_relu_impl.1} parent=0 // pred_check_branch
    %12 = sbr.rel (0) target = $region9
  $region8: #{_conv_relu_impl.1} parent=0 // pred_region
    _
  $region9: #{_conv_relu_impl.1} parent=0 // pred_fallthru
    _
  // Predicated region
  $region10: #{_conv_relu_impl.1} parent=0 // pred_check
    _
  $region11: #{_conv_relu_impl.1} parent=0 // pred_check_branch
    %14 = sbr.rel (0) target = $region13
  $region12: #{_conv_relu_impl.1} parent=0 // pred_region
    _
  $region13: #{_conv_relu_impl.1} parent=0 // pred_fallthru
    _
  // Predicated region
  $region14: #{_conv_relu_impl.1} parent=0 // pred_check
    _
  $region15: #{_conv_relu_impl.1} parent=0 // pred_check_branch
    %16 = sbr.rel (0) target = $region17
  $region16: #{_conv_relu_impl.1} parent=0 // pred_region
    _
  $region17: #{_conv_relu_impl.1} parent=0 // pred_fallthru
    _
  %v17 = vld [vmem:[%s1] sm:$0xff]
  %v18 = vld [vmem:[%s2] sm:$0xff]
  %v19 = vld [vmem:[%s0] sm:$0xff]
  %v20 = vld [vmem:[%s0 + $0x8] sm:$0xff]
  %21 = vrot.lane.b32.xlu0 %v19, 17
  %v22 = vpop.permute.xlu0 %21
  %23 = vrot.lane.b32.xlu0 %v20, 17
  %v24 = vpop.permute.xlu0 %23
  %v25 = vlaneseq
  %v26 = vand.u32 %v25, 127
  %vm27 = vcmp.lt.s32.totalorder %v26, 17
  %v28 = vsel %vm27, %v22, %v24
  %v29 = vsel %vm27, %v24, %v22
  %v30 = vld [vmem:[%s3] ss:$8 sm:$0x3]
  %v32 = vlaneseq
  %v33 = vshrl.u32 %v32, 7
  %v34 = vsub.s32 0, %v33
  %v35 = vrot.slane %v30, %v34
  %v36 = vlaneseq
  %v37 = vshrl.u32 %v36, 7
  %v38 = vsub.s32 1, %v37
  %v39 = vrot.slane %v30, %v38
  %v42 = vmul.f32 %v29, %v35
  %v43 = vmul.f32 %v28, %v39
  %44 = vrot.lane.b32.xlu0 %v19, 16
  %v45 = vpop.permute.xlu0 %44
  %46 = vrot.lane.b32.xlu0 %v20, 16
  %v47 = vpop.permute.xlu0 %46
  %vm48 = vcmp.lt.s32.totalorder %v26, 16
  %v49 = vsel %vm48, %v45, %v47
  %v50 = vsel %vm48, %v47, %v45
  %s51 = scalar_lea.vmem %s3, 1
  %v52 = vld [vmem:[%s51] ss:$8 sm:$0x3]
  %v54 = vlaneseq
  %v55 = vshrl.u32 %v54, 7
  %v56 = vsub.s32 0, %v55
  %v57 = vrot.slane %v52, %v56
  %v58 = vlaneseq
  %v59 = vshrl.u32 %v58, 7
  %v60 = vsub.s32 1, %v59
  %v61 = vrot.slane %v52, %v60
  %v64 = vmul.f32 %v50, %v57
  %v65 = vmul.f32 %v49, %v61
  %66 = vrot.lane.b32.xlu0 %v19, 15
  %v67 = vpop.permute.xlu0 %66
  %68 = vrot.lane.b32.xlu0 %v20, 15
  %v69 = vpop.permute.xlu0 %68
  %vm70 = vcmp.lt.s32.totalorder %v26, 15
  %v71 = vsel %vm70, %v67, %v69
  %v72 = vsel %vm70, %v69, %v67
  %s73 = scalar_lea.vmem %s3, 2
  %v74 = vld [vmem:[%s73] ss:$8 sm:$0x3]
  %v76 = vlaneseq
  %v77 = vshrl.u32 %v76, 7
  %v78 = vsub.s32 0, %v77
  %v79 = vrot.slane %v74, %v78
  %v80 = vlaneseq
  %v81 = vshrl.u32 %v80, 7
  %v82 = vsub.s32 1, %v81
  %v83 = vrot.slane %v74, %v82
  %v86 = vmul.f32 %v72, %v79
  %v87 = vmul.f32 %v71, %v83
  %88 = vrot.lane.b32.xlu0 %v19, 1
  %v89 = vpop.permute.xlu0 %88
  %90 = vrot.lane.b32.xlu0 %v20, 1
  %v91 = vpop.permute.xlu0 %90
  %vm92 = vcmp.lt.s32.totalorder %v26, 1
  %v93 = vsel %vm92, %v89, %v91
  %v94 = vsel %vm92, %v91, %v89
  %s95 = scalar_lea.vmem %s3, 3
  %v96 = vld [vmem:[%s95] ss:$8 sm:$0x3]
  %v98 = vlaneseq
  %v99 = vshrl.u32 %v98, 7
  %v100 = vsub.s32 0, %v99
  %v101 = vrot.slane %v96, %v100
  %v102 = vlaneseq
  %v103 = vshrl.u32 %v102, 7
  %v104 = vsub.s32 1, %v103
  %v105 = vrot.slane %v96, %v104
  %v108 = vmul.f32 %v94, %v101
  %v109 = vmul.f32 %v93, %v105
  %110 = vrot.lane.b32.xlu0 %v19, 127
  %v111 = vpop.permute.xlu0 %110
  %112 = vrot.lane.b32.xlu0 %v20, 127
  %v113 = vpop.permute.xlu0 %112
  %vm114 = vcmp.lt.s32.totalorder %v26, 127
  %v115 = vsel %vm114, %v111, %v113
  %v116 = vsel %vm114, %v113, %v111
  %s117 = scalar_lea.vmem %s3, 5
  %v118 = vld [vmem:[%s117] ss:$8 sm:$0x3]
  %v120 = vlaneseq
  %v121 = vshrl.u32 %v120, 7
  %v122 = vsub.s32 0, %v121
  %v123 = vrot.slane %v118, %v122
  %v124 = vlaneseq
  %v125 = vshrl.u32 %v124, 7
  %v126 = vsub.s32 1, %v125
  %v127 = vrot.slane %v118, %v126
  %v130 = vmul.f32 %v115, %v123
  %v131 = vmul.f32 %v116, %v127
  %132 = vrot.lane.b32.xlu0 %v19, 113
  %v133 = vpop.permute.xlu0 %132
  %134 = vrot.lane.b32.xlu0 %v20, 113
  %v135 = vpop.permute.xlu0 %134
  %vm136 = vcmp.lt.s32.totalorder %v26, 113
  %v137 = vsel %vm136, %v133, %v135
  %v138 = vsel %vm136, %v135, %v133
  %s139 = scalar_lea.vmem %s3, 6
  %v140 = vld [vmem:[%s139] ss:$8 sm:$0x3]
  %v142 = vlaneseq
  %v143 = vshrl.u32 %v142, 7
  %v144 = vsub.s32 0, %v143
  %v145 = vrot.slane %v140, %v144
  %v146 = vlaneseq
  %v147 = vshrl.u32 %v146, 7
  %v148 = vsub.s32 1, %v147
  %v149 = vrot.slane %v140, %v148
  %v152 = vmul.f32 %v137, %v145
  %v153 = vmul.f32 %v138, %v149
  %154 = vrot.lane.b32.xlu0 %v19, 112
  %v155 = vpop.permute.xlu0 %154
  %156 = vrot.lane.b32.xlu0 %v20, 112
  %v157 = vpop.permute.xlu0 %156
  %vm158 = vcmp.lt.s32.totalorder %v26, 112
  %v159 = vsel %vm158, %v155, %v157
  %v160 = vsel %vm158, %v157, %v155
  %s161 = scalar_lea.vmem %s3, 7
  %v162 = vld [vmem:[%s161] ss:$8 sm:$0x3]
  %v164 = vlaneseq
  %v165 = vshrl.u32 %v164, 7
  %v166 = vsub.s32 0, %v165
  %v167 = vrot.slane %v162, %v166
  %v168 = vlaneseq
  %v169 = vshrl.u32 %v168, 7
  %v170 = vsub.s32 1, %v169
  %v171 = vrot.slane %v162, %v170
  %v174 = vmul.f32 %v159, %v167
  %v175 = vmul.f32 %v160, %v171
  %176 = vrot.lane.b32.xlu0 %v19, 111
  %v177 = vpop.permute.xlu0 %176
  %178 = vrot.lane.b32.xlu0 %v20, 111
  %v179 = vpop.permute.xlu0 %178
  %vm180 = vcmp.lt.s32.totalorder %v26, 111
  %v181 = vsel %vm180, %v177, %v179
  %v182 = vsel %vm180, %v179, %v177
  %s183 = scalar_lea.vmem %s3, 16
  %v184 = vld [vmem:[%s183] ss:$8 sm:$0x3]
  %v186 = vlaneseq
  %v187 = vshrl.u32 %v186, 7
  %v188 = vsub.s32 0, %v187
  %v189 = vrot.slane %v184, %v188
  %v190 = vlaneseq
  %v191 = vshrl.u32 %v190, 7
  %v192 = vsub.s32 1, %v191
  %v193 = vrot.slane %v184, %v192
  %v196 = vmul.f32 %v181, %v189
  %v197 = vmul.f32 %v182, %v193
  %199 = vset.pattern.permute.xlu0 0
  %200 = vperm.xlu0 %199, %v18
  %v201 = vpop.permute.xlu0 %200
  %vm203 = vcmask 588800
  %v205 = vsel %vm203, %v17, 0
  %207 = vmatprep.subr.mxu0 %v43
  %208 = vmatpush1.msra.mxu0 %v42
  %209 = vmatprep.subr.mxu0 %v65
  %210 = vmatpush1.msra.mxu0 %v64
  %211 = vmatprep.subr.mxu0 %v87
  %212 = vmatpush1.msra.mxu0 %v86
  %213 = vmatprep.subr.mxu0 %v109
  %214 = vmatpush1.msra.mxu0 %v108
  %215 = vmatprep.subr.mxu0 %v20
  %216 = vmatpush1.msra.mxu0 %v19
  %217 = vmatprep.subr.mxu0 %v131
  %218 = vmatpush1.msra.mxu0 %v130
  %219 = vmatprep.subr.mxu0 %v153
  %220 = vmatpush1.msra.mxu0 %v152
  %221 = vmatprep.subr.mxu0 %v175
  %222 = vmatpush1.msra.mxu0 %v174
  %223 = vmatprep.subr.mxu0 %v197
  %224 = vmatpush1.msra.mxu0 %v196
  %225 = vmatprep.subr.mxu0 0.0
  %226 = vmatpush1.msra.mxu0 0.0
  %227 = vmatprep.subr.mxu0 0.0
  %228 = vmatpush1.msra.mxu0 0.0
  %229 = vmatprep.subr.mxu0 0.0
  %230 = vmatpush1.msra.mxu0 0.0
  %231 = vmatprep.subr.mxu0 0.0
  %232 = vmatpush1.msra.mxu0 0.0
  %233 = vmatprep.subr.mxu0 0.0
  %234 = vmatpush1.msra.mxu0 0.0
  %235 = vmatprep.subr.mxu0 0.0
  %236 = vmatpush1.msra.mxu0 0.0
  %237 = vmatprep.subr.mxu0 0.0
  %238 = vmatpush1.msra.mxu0 0.0
  %239 = vmatprep.subr.mxu0 0.0
  %240 = vmatpush1.msra.mxu0 0.0
  %241 = vmatprep.subr.mxu0 0.0
  %242 = vmatpush1.msra.mxu0 0.0
  %243 = vmatprep.subr.mxu0 0.0
  %244 = vmatpush1.msra.mxu0 0.0
  %245 = vmatprep.subr.mxu0 0.0
  %246 = vmatpush1.msra.mxu0 0.0
  %247 = vmatprep.subr.mxu0 0.0
  %248 = vmatpush1.msra.mxu0 0.0
  %249 = vmatprep.subr.mxu0 0.0
  %250 = vmatpush1.msra.mxu0 0.0
  %251 = vmatprep.subr.mxu0 0.0
  %252 = vmatpush1.msra.mxu0 0.0
  %253 = vmatprep.subr.mxu0 0.0
  %254 = vmatpush1.msra.mxu0 0.0
  %255 = vmatprep.subr.mxu0 0.0
  %256 = vmatpush1.msra.mxu0 0.0
  %257 = vmatprep.subr.mxu0 0.0
  %258 = vmatpush1.msra.mxu0 0.0
  %259 = vmatprep.subr.mxu0 0.0
  %260 = vmatpush1.msra.mxu0 0.0
  %261 = vmatprep.subr.mxu0 0.0
  %262 = vmatpush1.msra.mxu0 0.0
  %263 = vmatprep.subr.mxu0 0.0
  %264 = vmatpush1.msra.mxu0 0.0
  %265 = vmatprep.subr.mxu0 0.0
  %266 = vmatpush1.msra.mxu0 0.0
  %267 = vmatprep.subr.mxu0 0.0
  %268 = vmatpush1.msra.mxu0 0.0
  %269 = vmatprep.subr.mxu0 0.0
  %270 = vmatpush1.msra.mxu0 0.0
  %271 = vmatprep.mubr.f32.mxu0 0.0
  %272 = vmatmul.mubr.f32.gmra.mrb[0].mxu0 %v205
  %v273 = vpop.f32.mrb[0].mxu0
  %v274 = vadd.f32 %v201, %v273
  %v275 = vpop.f32.mrb[0].mxu0
  %v276 = vadd.f32 %v201, %v275
  %277 = vdwg.mxu0
  %vm278 = vcmp.gt.f32.partialorder %v274, 0.0
  %vm279 = vcmp.gt.f32.partialorder %v276, 0.0
  %v280 = vmul.f32 %v274, 0.01
  %v281 = vmul.f32 %v276, 0.01
  %v282 = vsel %vm278, %v274, %v280
  %v283 = vsel %vm279, %v276, %v281
  %284 = vst [vmem:[%s4] sm:$0xff] %v282
  %285 = vst [vmem:[%s4 + $0x8] sm:$0xff] %v283
  %s286 = scalar_lea.vmem %s0, 16
  %v287 = vld [vmem:[%s286] sm:$0xff]
  %v288 = vld [vmem:[%s286 + $0x8] sm:$0xff]
  %289 = vrot.lane.b32.xlu0 %v287, 17
  %v290 = vpop.permute.xlu0 %289
  %291 = vrot.lane.b32.xlu0 %v288, 17
  %v292 = vpop.permute.xlu0 %291
  %v293 = vsel %vm27, %v290, %v292
  %v294 = vsel %vm27, %v292, %v290
  %v295 = vld [vmem:[%s3] ss:$8 sm:$0x3]
  %v297 = vlaneseq
  %v298 = vshrl.u32 %v297, 7
  %v299 = vsub.s32 0, %v298
  %v300 = vrot.slane %v295, %v299
  %v301 = vlaneseq
  %v302 = vshrl.u32 %v301, 7
  %v303 = vsub.s32 1, %v302
  %v304 = vrot.slane %v295, %v303
  %v307 = vmul.f32 %v294, %v300
  %v308 = vmul.f32 %v293, %v304
  %309 = vrot.lane.b32.xlu0 %v287, 16
  %v310 = vpop.permute.xlu0 %309
  %311 = vrot.lane.b32.xlu0 %v288, 16
  %v312 = vpop.permute.xlu0 %311
  %v313 = vsel %vm48, %v310, %v312
  %v314 = vsel %vm48, %v312, %v310
  %v315 = vld [vmem:[%s51] ss:$8 sm:$0x3]
  %v317 = vlaneseq
  %v318 = vshrl.u32 %v317, 7
  %v319 = vsub.s32 0, %v318
  %v320 = vrot.slane %v315, %v319
  %v321 = vlaneseq
  %v322 = vshrl.u32 %v321, 7
  %v323 = vsub.s32 1, %v322
  %v324 = vrot.slane %v315, %v323
  %v327 = vmul.f32 %v314, %v320
  %v328 = vmul.f32 %v313, %v324
  %329 = vrot.lane.b32.xlu0 %v287, 15
  %v330 = vpop.permute.xlu0 %329
  %331 = vrot.lane.b32.xlu0 %v288, 15
  %v332 = vpop.permute.xlu0 %331
  %v333 = vsel %vm70, %v330, %v332
  %v334 = vsel %vm70, %v332, %v330
  %v335 = vld [vmem:[%s73] ss:$8 sm:$0x3]
  %v337 = vlaneseq
  %v338 = vshrl.u32 %v337, 7
  %v339 = vsub.s32 0, %v338
  %v340 = vrot.slane %v335, %v339
  %v341 = vlaneseq
  %v342 = vshrl.u32 %v341, 7
  %v343 = vsub.s32 1, %v342
  %v344 = vrot.slane %v335, %v343
  %v347 = vmul.f32 %v334, %v340
  %v348 = vmul.f32 %v333, %v344
  %349 = vrot.lane.b32.xlu0 %v287, 1
  %v350 = vpop.permute.xlu0 %349
  %351 = vrot.lane.b32.xlu0 %v288, 1
  %v352 = vpop.permute.xlu0 %351
  %v353 = vsel %vm92, %v350, %v352
  %v354 = vsel %vm92, %v352, %v350
  %v355 = vld [vmem:[%s95] ss:$8 sm:$0x3]
  %v357 = vlaneseq
  %v358 = vshrl.u32 %v357, 7
  %v359 = vsub.s32 0, %v358
  %v360 = vrot.slane %v355, %v359
  %v361 = vlaneseq
  %v362 = vshrl.u32 %v361, 7
  %v363 = vsub.s32 1, %v362
  %v364 = vrot.slane %v355, %v363
  %v367 = vmul.f32 %v354, %v360
  %v368 = vmul.f32 %v353, %v364
  %369 = vrot.lane.b32.xlu0 %v287, 127
  %v370 = vpop.permute.xlu0 %369
  %371 = vrot.lane.b32.xlu0 %v288, 127
  %v372 = vpop.permute.xlu0 %371
  %v373 = vsel %vm114, %v370, %v372
  %v374 = vsel %vm114, %v372, %v370
  %v375 = vld [vmem:[%s117] ss:$8 sm:$0x3]
  %v377 = vlaneseq
  %v378 = vshrl.u32 %v377, 7
  %v379 = vsub.s32 0, %v378
  %v380 = vrot.slane %v375, %v379
  %v381 = vlaneseq
  %v382 = vshrl.u32 %v381, 7
  %v383 = vsub.s32 1, %v382
  %v384 = vrot.slane %v375, %v383
  %v387 = vmul.f32 %v373, %v380
  %v388 = vmul.f32 %v374, %v384
  %389 = vrot.lane.b32.xlu0 %v287, 113
  %v390 = vpop.permute.xlu0 %389
  %391 = vrot.lane.b32.xlu0 %v288, 113
  %v392 = vpop.permute.xlu0 %391
  %v393 = vsel %vm136, %v390, %v392
  %v394 = vsel %vm136, %v392, %v390
  %v395 = vld [vmem:[%s139] ss:$8 sm:$0x3]
  %v397 = vlaneseq
  %v398 = vshrl.u32 %v397, 7
  %v399 = vsub.s32 0, %v398
  %v400 = vrot.slane %v395, %v399
  %v401 = vlaneseq
  %v402 = vshrl.u32 %v401, 7
  %v403 = vsub.s32 1, %v402
  %v404 = vrot.slane %v395, %v403
  %v407 = vmul.f32 %v393, %v400
  %v408 = vmul.f32 %v394, %v404
  %409 = vrot.lane.b32.xlu0 %v287, 112
  %v410 = vpop.permute.xlu0 %409
  %411 = vrot.lane.b32.xlu0 %v288, 112
  %v412 = vpop.permute.xlu0 %411
  %v413 = vsel %vm158, %v410, %v412
  %v414 = vsel %vm158, %v412, %v410
  %v415 = vld [vmem:[%s161] ss:$8 sm:$0x3]
  %v417 = vlaneseq
  %v418 = vshrl.u32 %v417, 7
  %v419 = vsub.s32 0, %v418
  %v420 = vrot.slane %v415, %v419
  %v421 = vlaneseq
  %v422 = vshrl.u32 %v421, 7
  %v423 = vsub.s32 1, %v422
  %v424 = vrot.slane %v415, %v423
  %v427 = vmul.f32 %v413, %v420
  %v428 = vmul.f32 %v414, %v424
  %429 = vrot.lane.b32.xlu0 %v287, 111
  %v430 = vpop.permute.xlu0 %429
  %431 = vrot.lane.b32.xlu0 %v288, 111
  %v432 = vpop.permute.xlu0 %431
  %v433 = vsel %vm180, %v430, %v432
  %v434 = vsel %vm180, %v432, %v430
  %v435 = vld [vmem:[%s183] ss:$8 sm:$0x3]
  %v437 = vlaneseq
  %v438 = vshrl.u32 %v437, 7
  %v439 = vsub.s32 0, %v438
  %v440 = vrot.slane %v435, %v439
  %v441 = vlaneseq
  %v442 = vshrl.u32 %v441, 7
  %v443 = vsub.s32 1, %v442
  %v444 = vrot.slane %v435, %v443
  %v447 = vmul.f32 %v433, %v440
  %v448 = vmul.f32 %v434, %v444
  %449 = vmatprep.subr.mxu0 %v308
  %450 = vmatpush1.msra.mxu0 %v307
  %451 = vmatprep.subr.mxu0 %v328
  %452 = vmatpush1.msra.mxu0 %v327
  %453 = vmatprep.subr.mxu0 %v348
  %454 = vmatpush1.msra.mxu0 %v347
  %455 = vmatprep.subr.mxu0 %v368
  %456 = vmatpush1.msra.mxu0 %v367
  %457 = vmatprep.subr.mxu0 %v288
  %458 = vmatpush1.msra.mxu0 %v287
  %459 = vmatprep.subr.mxu0 %v388
  %460 = vmatpush1.msra.mxu0 %v387
  %461 = vmatprep.subr.mxu0 %v408
  %462 = vmatpush1.msra.mxu0 %v407
  %463 = vmatprep.subr.mxu0 %v428
  %464 = vmatpush1.msra.mxu0 %v427
  %465 = vmatprep.subr.mxu0 %v448
  %466 = vmatpush1.msra.mxu0 %v447
  %467 = vmatprep.subr.mxu0 0.0
  %468 = vmatpush1.msra.mxu0 0.0
  %469 = vmatprep.subr.mxu0 0.0
  %470 = vmatpush1.msra.mxu0 0.0
  %471 = vmatprep.subr.mxu0 0.0
  %472 = vmatpush1.msra.mxu0 0.0
  %473 = vmatprep.subr.mxu0 0.0
  %474 = vmatpush1.msra.mxu0 0.0
  %475 = vmatprep.subr.mxu0 0.0
  %476 = vmatpush1.msra.mxu0 0.0
  %477 = vmatprep.subr.mxu0 0.0
  %478 = vmatpush1.msra.mxu0 0.0
  %479 = vmatprep.subr.mxu0 0.0
  %480 = vmatpush1.msra.mxu0 0.0
  %481 = vmatprep.subr.mxu0 0.0
  %482 = vmatpush1.msra.mxu0 0.0
  %483 = vmatprep.subr.mxu0 0.0
  %484 = vmatpush1.msra.mxu0 0.0
  %485 = vmatprep.subr.mxu0 0.0
  %486 = vmatpush1.msra.mxu0 0.0
  %487 = vmatprep.subr.mxu0 0.0
  %488 = vmatpush1.msra.mxu0 0.0
  %489 = vmatprep.subr.mxu0 0.0
  %490 = vmatpush1.msra.mxu0 0.0
  %491 = vmatprep.subr.mxu0 0.0
  %492 = vmatpush1.msra.mxu0 0.0
  %493 = vmatprep.subr.mxu0 0.0
  %494 = vmatpush1.msra.mxu0 0.0
  %495 = vmatprep.subr.mxu0 0.0
  %496 = vmatpush1.msra.mxu0 0.0
  %497 = vmatprep.subr.mxu0 0.0
  %498 = vmatpush1.msra.mxu0 0.0
  %499 = vmatprep.subr.mxu0 0.0
  %500 = vmatpush1.msra.mxu0 0.0
  %501 = vmatprep.subr.mxu0 0.0
  %502 = vmatpush1.msra.mxu0 0.0
  %503 = vmatprep.subr.mxu0 0.0
  %504 = vmatpush1.msra.mxu0 0.0
  %505 = vmatprep.subr.mxu0 0.0
  %506 = vmatpush1.msra.mxu0 0.0
  %507 = vmatprep.subr.mxu0 0.0
  %508 = vmatpush1.msra.mxu0 0.0
  %509 = vmatprep.subr.mxu0 0.0
  %510 = vmatpush1.msra.mxu0 0.0
  %511 = vmatprep.subr.mxu0 0.0
  %512 = vmatpush1.msra.mxu0 0.0
  %513 = vmatprep.mubr.f32.mxu0 0.0
  %514 = vmatmul.mubr.f32.gmra.mrb[0].mxu0 %v205
  %v515 = vpop.f32.mrb[0].mxu0
  %v516 = vadd.f32 %v201, %v515
  %v517 = vpop.f32.mrb[0].mxu0
  %v518 = vadd.f32 %v201, %v517
  %519 = vdwg.mxu0
  %vm520 = vcmp.gt.f32.partialorder %v516, 0.0
  %vm521 = vcmp.gt.f32.partialorder %v518, 0.0
  %v522 = vmul.f32 %v516, 0.01
  %v523 = vmul.f32 %v518, 0.01
  %v524 = vsel %vm520, %v516, %v522
  %v525 = vsel %vm521, %v518, %v523
  %s526 = scalar_lea.vmem %s4, 16
  %527 = vst [vmem:[%s526] sm:$0xff] %v524
  %528 = vst [vmem:[%s526 + $0x8] sm:$0xff] %v525
  // Predicated region
  $region18: #{_conv_relu_impl.1} parent=0 // pred_check
    _
  $region19: #{_conv_relu_impl.1} parent=0 // pred_check_branch
    %530 = sbr.rel (0) target = $region21
  $region20: #{_conv_relu_impl.1} parent=0 // pred_region
    _
  $region21: #{_conv_relu_impl.1} parent=0 // pred_fallthru
    _
  // Predicated region
  $region22: #{_conv_relu_impl.1} parent=0 // pred_check
    _
  $region23: #{_conv_relu_impl.1} parent=0 // pred_check_branch
    %532 = sbr.rel (0) target = $region25
  $region24: #{_conv_relu_impl.1} parent=0 // pred_region
    _
  $region25: #{_conv_relu_impl.1} parent=0 // pred_fallthru
    _

</llo_original>
